<compile_context>
chip_gen: v7x
topology: tpu7x:2x2x1
jax: 0.10.0
libtpu: 0.0.40
codegen_flags: <defaults>
</compile_context>

<pallas_src>
import functools

import jax
import jax.numpy as jnp
from jax import lax
from jax.experimental import pallas as pl
from jax.experimental.pallas import tpu as pltpu


def _round_up(x: int, m: int) -> int:
    return ((x + m - 1) // m) * m


def _vmem_limit_bytes() -> int:
    """Per-generation VMEM limit: 0.75 * physical, capped at 96 MiB.

    Fallback of 64 MiB physical (-> 48 MiB limit) is safe on v7x.
    """
    cap = 64 * 1024 * 1024
    try:
        cap = int(getattr(pltpu.get_tpu_info(), "vmem_capacity_bytes", cap))
    except Exception:
        pass
    return min(int(cap * 0.75), 96 * 1024 * 1024)


def _select_tiles(b: int, d: int, c: int, budget: int):
    """Pick (tm, tn, b_pad). tm = bandwidth knob (big); tn = streamed tile."""
    b_pad = _round_up(max(b, 1), 128)
    c_pad = _round_up(max(c, 1), 128)          # lane-padded width for VMEM estimate

    def footprint(tm, tn):
        zi = 2 * tm * d * 2                    # zn_i tile, bf16, double-buffered
        zj = 2 * tn * d * 2                    # zn_j tile, bf16, double-buffered
        oh = 2 * tn * c_pad * 2                # one-hot(y_j), bf16
        rowi = 2 * tm * c_pad * 4 + 4 * tm * 128 * 4   # ty/wq + bias + out (lane pad)
        scr = tm * c_pad * 4 + 2 * tm * 128 * 4        # acc_c + (m_s, l_s)/acc
        return zi + zj + oh + rowi + scr

    # tm: grow aggressively (each doubling halves full passes over z from HBM),
    # but keep grid_i >= 2 for megacore whenever the batch allows it.
    tm = 128
    for cand in (1024, 512, 256, 128):
        if b_pad % cand:
            continue
        if b_pad >= 256 and cand > b_pad // 2:
            continue
        if footprint(cand, 128) <= budget:
            tm = cand
            break

    # tn: 128-512, never larger than tm, must still fit VMEM.
    tn = 128
    for cand in (512, 256):
        if cand <= tm and b_pad % cand == 0 and footprint(tm, cand) <= budget:
            tn = cand
            break

    return tm, tn, b_pad


# ----------------------------------------------------------------------------
# Kernels.  Grid = (i over row tiles, j over column tiles); j is the reduction
# axis (last), outputs / scratch are resident across it.
# ----------------------------------------------------------------------------
def _sim_tile(zi_ref, zj_ref):
    """sim = zn_i @ zn_j.T (NT dot contracting D, bf16 MXU, f32 accumulate)."""
    return lax.dot_general(zi_ref[...], zj_ref[...],
                           (((1,), (1,)), ((), ())),
                           preferred_element_type=jnp.float32)


def _mse_kernel(zi_ref, zj_ref, ty_ref, oh_ref, out_ref, acc):
    j = pl.program_id(1)

    @pl.when(j == 0)
    def _():
        acc[...] = jnp.zeros_like(acc)

    sim = _sim_tile(zi_ref, zj_ref)
    # target tile T[y_i, y_j] == ty_i @ onehot(y_j).T (one-hot is exact in bf16)
    tgt = lax.dot_general(ty_ref[...], oh_ref[...],
                          (((1,), (1,)), ((), ())),
                          preferred_element_type=jnp.float32)
    diff = sim - tgt
    acc[...] += jnp.sum(diff * diff, axis=1, keepdims=True)

    @pl.when(j == pl.num_programs(1) - 1)
    def _():
        out_ref[...] = acc[...]          # single (masked) 1-lane store per row tile


def _kl_kernel(zi_ref, zj_ref, oh_ref, wq_ref, bias_ref, mask_ref, out_ref,
               m_s, l_s, acc_c):
    j = pl.program_id(1)

    @pl.when(j == 0)
    def _():
        m_s[...] = jnp.full_like(m_s, -jnp.inf)
        l_s[...] = jnp.zeros_like(l_s)
        acc_c[...] = jnp.zeros_like(acc_c)

    sim = _sim_tile(zi_ref, zj_ref)

    # Per-class column sums: acc_c[a, c] += sum_{b in tile, y_j[b]==c} sim[a, b]
    acc_c[...] += jnp.dot(sim.astype(jnp.bfloat16), oh_ref[...],
                          preferred_element_type=jnp.float32)

    # Online logsumexp of sim rows; padded columns carry a -1e30 additive bias.
    sim_m = sim + mask_ref[...]                               # (tm,tn) + (1,tn)
    m_new = jnp.maximum(m_s[...], jnp.max(sim_m, axis=1, keepdims=True))
    l_s[...] = (jnp.exp(m_s[...] - m_new) * l_s[...]
                + jnp.sum(jnp.exp(sim_m - m_new), axis=1, keepdims=True))
    m_s[...] = m_new

    @pl.when(j == pl.num_programs(1) - 1)
    def _():
        lse_s = m_s[...] + jnp.log(l_s[...])
        # sum_b q[a,b]*sim[a,b] = sum_c exp(T[y_a,c]-lse_t[a]) * acc_c[a,c]
        qsim = jnp.sum(wq_ref[...] * acc_c[...], axis=1, keepdims=True)
        # kl_row = sum_b q*(tgt - lse_t) - sum_b q*sim + lse_s
        out_ref[...] = bias_ref[...] - qsim + lse_s


# ----------------------------------------------------------------------------
# Wrapper
# ----------------------------------------------------------------------------
def _loss(mode, z, y, t):
    b, d = z.shape
    c = t.shape[0]
    vmem_limit = _vmem_limit_bytes()
    tm, tn, b_pad = _select_tiles(b, d, c, int(0.8 * vmem_limit))
    pad = b_pad - b

    # Hoisted row normalization (F.normalize eps=1e-12 semantics) + bf16 cast.
    zf = z.astype(jnp.float32)
    ssq = jnp.sum(zf * zf, axis=1, keepdims=True)
    zn = (zf * lax.rsqrt(jnp.maximum(ssq, 1e-24))).astype(jnp.bfloat16)

    # Hoisted class gather / one-hot (O(B*C), trivial next to the B^2*D kernel).
    y32 = y.astype(jnp.int32)
    tf = t.astype(jnp.float32)
    ty = jnp.take(tf, y32, axis=0)                            # (B, C)
    oh = jax.nn.one_hot(y32, c, dtype=jnp.float32)            # (B, C)

    zn_p = jnp.pad(zn, ((0, pad), (0, 0)))
    oh_p = jnp.pad(oh, ((0, pad), (0, 0))).astype(jnp.bfloat16)

    grid = (b_pad // tm, b_pad // tn)
    cparams = pltpu.CompilerParams(
        dimension_semantics=("parallel", "arbitrary"),
        vmem_limit_bytes=vmem_limit,
    )

    if mode == "mse":
        ty_p = jnp.pad(ty, ((0, pad), (0, 0))).astype(jnp.bfloat16)
        grid_spec = pltpu.PrefetchScalarGridSpec(
            num_scalar_prefetch=0,
            grid=grid,
            in_specs=[
                pl.BlockSpec((tm, d), lambda i, j: (i, 0)),   # zn row tile i
                pl.BlockSpec((tn, d), lambda i, j: (j, 0)),   # zn row tile j (streamed)
                pl.BlockSpec((tm, c), lambda i, j: (i, 0)),   # ty_i = T[y_i]
                pl.BlockSpec((tn, c), lambda i, j: (j, 0)),   # one-hot(y_j)
            ],
            out_specs=pl.BlockSpec((tm, 1), lambda i, j: (i, 0)),
            scratch_shapes=[pltpu.VMEM((tm, 1), jnp.float32)],
        )
        rows = pl.pallas_call(
            _mse_kernel,
            out_shape=jax.ShapeDtypeStruct((b_pad, 1), jnp.float32),
            grid_spec=grid_spec,
            compiler_params=cparams,
        )(zn_p, zn_p, ty_p, oh_p)
        return jnp.sum(rows[:b]) / jnp.float32(b * b)         # mean over B^2

    # ---- KL: class-structured target-side softmax, precomputed in JAX glue ----
    counts = jnp.sum(oh, axis=0)                              # (C,) class counts
    lse_t = jax.nn.logsumexp(ty + jnp.log(counts)[None, :], axis=1, keepdims=True)
    wq = jnp.exp(ty - lse_t)                                  # q-weight per class
    qtgt = jnp.sum(counts[None, :] * wq * ty, axis=1, keepdims=True)   # sum_b q*tgt
    bias = qtgt - lse_t                                       # (B, 1)

    wq_p = jnp.pad(wq, ((0, pad), (0, 0)))
    bias_p = jnp.pad(bias, ((0, pad), (0, 0)))
    colmask = jnp.concatenate(
        [jnp.zeros((1, b), jnp.float32),
         jnp.full((1, pad), -1e30, jnp.float32)], axis=1)     # (1, B_pad)

    grid_spec = pltpu.PrefetchScalarGridSpec(
        num_scalar_prefetch=0,
        grid=grid,
        in_specs=[
            pl.BlockSpec((tm, d), lambda i, j: (i, 0)),       # zn row tile i
            pl.BlockSpec((tn, d), lambda i, j: (j, 0)),       # zn row tile j (streamed)
            pl.BlockSpec((tn, c), lambda i, j: (j, 0)),       # one-hot(y_j)
            pl.BlockSpec((tm, c), lambda i, j: (i, 0)),       # wq_i
            pl.BlockSpec((tm, 1), lambda i, j: (i, 0)),       # bias_i
            pl.BlockSpec((1, tn), lambda i, j: (0, j)),       # padded-column mask
        ],
        out_specs=pl.BlockSpec((tm, 1), lambda i, j: (i, 0)),
        scratch_shapes=[pltpu.VMEM((tm, 1), jnp.float32),     # m_s
                        pltpu.VMEM((tm, 1), jnp.float32),     # l_s
                        pltpu.VMEM((tm, c), jnp.float32)],    # per-class sim sums
    )
    rows = pl.pallas_call(
        _kl_kernel,
        out_shape=jax.ShapeDtypeStruct((b_pad, 1), jnp.float32),
        grid_spec=grid_spec,
        compiler_params=cparams,
    )(zn_p, zn_p, oh_p, wq_p, bias_p, colmask)
    return jnp.sum(rows[:b]) / jnp.float32(b)                 # reduction='batchmean'


class FullSimilarityMatrixLoss:
    """JAX/Pallas port of the PyTorch FullSimilarityMatrixLoss module."""

    def __init__(self, target_similarity, mode="mse"):
        assert mode in {"mse", "kl"}, "mode must be 'mse' or 'kl'"
        self.target_similarity = jnp.asarray(target_similarity, dtype=jnp.float32)
        self.mode = mode
        self._fn = jax.jit(functools.partial(_loss, mode))

    def __call__(self, z, y):
        return self._fn(z, y, self.target_similarity)


def _reference_loss(z, y, t, mode):
    """Pure-JAX reference mirroring the PyTorch forward (f32 end-to-end)."""
    zf = z.astype(jnp.float32)
    zn = zf / jnp.maximum(jnp.linalg.norm(zf, axis=1, keepdims=True), 1e-12)
    sim = zn @ zn.T
    tgt = t[y][:, y]
    if mode == "mse":
        return jnp.mean((sim - tgt) ** 2)
    log_p = jax.nn.log_softmax(sim, axis=1)
    q = jax.nn.softmax(tgt, axis=1)
    return jnp.sum(q * (jnp.log(q) - log_p)) / z.shape[0]


if __name__ == "__main__":
    key = jax.random.PRNGKey(0)
    k_t, k_z, k_y = jax.random.split(key, 3)

    B, D, C = 8, 32, 4  # batch, embedding dim, number of classes

    # Deterministic synthetic class-level target similarity matrix (symmetric).
    t_raw = jax.random.normal(k_t, (C, C), dtype=jnp.float32)
    target_similarity = 0.5 * (t_raw + t_raw.T)

    z = jax.random.normal(k_z, (B, D), dtype=jnp.float32)
    y = jax.random.randint(k_y, (B,), 0, C, dtype=jnp.int32)

    loss_mse = FullSimilarityMatrixLoss(target_similarity, mode="mse")(z, y)
    loss_kl = FullSimilarityMatrixLoss(target_similarity, mode="kl")(z, y)
    jax.block_until_ready((loss_mse, loss_kl))

    ref_mse = float(_reference_loss(z, y, target_similarity, "mse"))
    ref_kl = float(_reference_loss(z, y, target_similarity, "kl"))
    assert abs(float(loss_mse) - ref_mse) <= 2e-2 + 2e-2 * abs(ref_mse), (loss_mse, ref_mse)
    assert abs(float(loss_kl) - ref_kl) <= 2e-2 + 2e-2 * abs(ref_kl), (loss_kl, ref_kl)

    print("KERNEL_OK")
</pallas_src>

<mosaic_0001>
module attributes {stable_mosaic.version = 11 : i64} {
  func.func @_mse_kernel(%arg0: i32, %arg1: i32, %arg2: memref<128x32xbf16, #tpu.memory_space<vmem>>, %arg3: memref<128x32xbf16, #tpu.memory_space<vmem>>, %arg4: memref<128x4xbf16, #tpu.memory_space<vmem>>, %arg5: memref<128x4xbf16, #tpu.memory_space<vmem>>, %arg6: memref<128x1xf32, #tpu.memory_space<vmem>>, %arg7: memref<128x1xf32, #tpu.memory_space<vmem>>) attributes {dimension_semantics = [#tpu.dimension_semantics<parallel>, #tpu.dimension_semantics<arbitrary>], iteration_bounds = array<i64: 1, 1>, scalar_prefetch = 0 : i64, scratch_operands = 1 : i64, tpu.core_type = #tpu.core_type<tc>, window_params = [{transform_indices = @transform_0, window_bounds = array<i64: 128, 32>}, {transform_indices = @transform_1, window_bounds = array<i64: 128, 32>}, {transform_indices = @transform_2, window_bounds = array<i64: 128, 4>}, {transform_indices = @transform_3, window_bounds = array<i64: 128, 4>}, {transform_indices = @transform_4, window_bounds = array<i64: 128, 1>}]} {
    %c0_i32 = arith.constant 0 : i32
    %0 = arith.cmpi eq, %arg1, %c0_i32 : i32
    %1 = arith.extui %0 : i1 to i32
    %c0_i32_0 = arith.constant 0 : i32
    %2 = arith.cmpi ne, %1, %c0_i32_0 : i32
    scf.if %2 {
      %cst_16 = arith.constant 0.000000e+00 : f32
      %19 = vector.broadcast %cst_16 : f32 to vector<128x1xf32>
      %c0_17 = arith.constant 0 : index
      %c0_18 = arith.constant 0 : index
      %20 = vector.load %arg7[%c0_17, %c0_18] : memref<128x1xf32, #tpu.memory_space<vmem>>, vector<128x1xf32>
      tpu.vector_store %arg7[%c0_17, %c0_18], %19 {strides = array<i32>} : memref<128x1xf32, #tpu.memory_space<vmem>>, vector<128x1xf32>,
    } else {
    }
    %c0 = arith.constant 0 : index
    %c0_1 = arith.constant 0 : index
    %3 = vector.load %arg2[%c0, %c0_1] : memref<128x32xbf16, #tpu.memory_space<vmem>>, vector<128x32xbf16>
    %c0_2 = arith.constant 0 : index
    %c0_3 = arith.constant 0 : index
    %4 = vector.load %arg3[%c0_2, %c0_3] : memref<128x32xbf16, #tpu.memory_space<vmem>>, vector<128x32xbf16>
    %cst = arith.constant dense<0.000000e+00> : vector<128x128xf32>
    %5 = tpu.matmul %3, %4, %cst {dimension_numbers = #tpu.dot_dimension_numbers<[1], [1], [0], [0], [0, 0, 1, 0], [], []>} : vector<128x32xbf16>, vector<128x32xbf16>, vector<128x128xf32> -> vector<128x128xf32>
    %c0_4 = arith.constant 0 : index
    %c0_5 = arith.constant 0 : index
    %6 = vector.load %arg4[%c0_4, %c0_5] : memref<128x4xbf16, #tpu.memory_space<vmem>>, vector<128x4xbf16>
    %c0_6 = arith.constant 0 : index
    %c0_7 = arith.constant 0 : index
    %7 = vector.load %arg5[%c0_6, %c0_7] : memref<128x4xbf16, #tpu.memory_space<vmem>>, vector<128x4xbf16>
    %cst_8 = arith.constant dense<0.000000e+00> : vector<128x128xf32>
    %8 = tpu.matmul %6, %7, %cst_8 {dimension_numbers = #tpu.dot_dimension_numbers<[1], [1], [0], [0], [0, 0, 1, 0], [], []>} : vector<128x4xbf16>, vector<128x4xbf16>, vector<128x128xf32> -> vector<128x128xf32>
    %9 = arith.subf %5, %8 : vector<128x128xf32>
    %c0_9 = arith.constant 0 : index
    %c0_10 = arith.constant 0 : index
    %10 = vector.load %arg7[%c0_9, %c0_10] : memref<128x1xf32, #tpu.memory_space<vmem>>, vector<128x1xf32>
    %11 = arith.mulf %9, %9 : vector<128x128xf32>
    %cst_11 = arith.constant dense<0.000000e+00> : vector<128xf32>
    %12 = vector.multi_reduction <add>, %11, %cst_11 [1] : vector<128x128xf32> to vector<128xf32>
    %13 = vector.shape_cast %12 : vector<128xf32> to vector<128x1xf32>
    %14 = arith.addf %10, %13 : vector<128x1xf32>
    %c0_12 = arith.constant 0 : index
    %c0_13 = arith.constant 0 : index
    %15 = vector.load %arg7[%c0_12, %c0_13] : memref<128x1xf32, #tpu.memory_space<vmem>>, vector<128x1xf32>
    tpu.vector_store %arg7[%c0_12, %c0_13], %14 {strides = array<i32>} : memref<128x1xf32, #tpu.memory_space<vmem>>, vector<128x1xf32>,
    %c0_i32_14 = arith.constant 0 : i32
    %16 = arith.cmpi eq, %arg1, %c0_i32_14 : i32
    %17 = arith.extui %16 : i1 to i32
    %c0_i32_15 = arith.constant 0 : i32
    %18 = arith.cmpi ne, %17, %c0_i32_15 : i32
    scf.if %18 {
      %c0_16 = arith.constant 0 : index
      %c0_17 = arith.constant 0 : index
      %19 = vector.load %arg7[%c0_16, %c0_17] : memref<128x1xf32, #tpu.memory_space<vmem>>, vector<128x1xf32>
      %c0_18 = arith.constant 0 : index
      %c0_19 = arith.constant 0 : index
      %20 = vector.load %arg6[%c0_18, %c0_19] : memref<128x1xf32, #tpu.memory_space<vmem>>, vector<128x1xf32>
      tpu.vector_store %arg6[%c0_18, %c0_19], %19 {strides = array<i32>} : memref<128x1xf32, #tpu.memory_space<vmem>>, vector<128x1xf32>,
    } else {
    }
    return
  }
  func.func @transform_0(%arg0: i32, %arg1: i32) -> (i32, i32) {
    %c0_i32 = arith.constant 0 : i32
    %c0_i32_0 = arith.constant 0 : i32
    return %arg0, %c0_i32 : i32, i32
  }
  func.func @transform_1(%arg0: i32, %arg1: i32) -> (i32, i32) {
    %c0_i32 = arith.constant 0 : i32
    %c0_i32_0 = arith.constant 0 : i32
    return %arg1, %c0_i32 : i32, i32
  }
  func.func @transform_2(%arg0: i32, %arg1: i32) -> (i32, i32) {
    %c0_i32 = arith.constant 0 : i32
    %c0_i32_0 = arith.constant 0 : i32
    return %arg0, %c0_i32 : i32, i32
  }
  func.func @transform_3(%arg0: i32, %arg1: i32) -> (i32, i32) {
    %c0_i32 = arith.constant 0 : i32
    %c0_i32_0 = arith.constant 0 : i32
    return %arg1, %c0_i32 : i32, i32
  }
  func.func @transform_4(%arg0: i32, %arg1: i32) -> (i32, i32) {
    %c0_i32 = arith.constant 0 : i32
    %c0_i32_0 = arith.constant 0 : i32
    return %arg0, %c0_i32 : i32, i32
  }
}

</mosaic_0001>

<llo_original>
// kernel: _loss.1
$region0: #{_loss.1}
  #allocation0 [shape = 'u32[]', space=smem, size = 0x4, offset = 0x4, fixed_abs, tag = 'smem constant byte address 0x4 - core index']
  #allocation1 [shape = 'u32[144,128]{1,0:T(1,128)}', space=vmem, size = 0x12000, scoped, tag = 'internal scratch']
  #allocation2 [shape = 'f32[128,1]{1,0:T(8,128)}', space=vmem, size = 0x10000, scoped, tag = 'scratch operand']
  %s0 = inlined_call_operand.vmem [shape: bf16[128,32], index: 0, kind: input, shape index: {}, may-alias: {0,1}]
  %s1 = inlined_call_operand.vmem [shape: bf16[128,32], index: 1, kind: input, shape index: {}, may-alias: {0,1}]
  %s2 = inlined_call_operand.vmem [shape: bf16[128,4], index: 2, kind: input, shape index: {}]
  %s3 = inlined_call_operand.vmem [shape: bf16[128,4], index: 3, kind: input, shape index: {}]
  %s4 = inlined_call_operand.vmem [shape: f32[128,1], index: 4, kind: output, shape index: {}]
  %s5 = sld [smem:[#allocation0]]
  $region34: #{_loss.1} parent=0
    _
  %s7 = ssub.s32 1, %s5
  %s8 = scalar_select 0, %s7, %s5
  // Predicated region
  $region2: #{_loss.1} parent=0 // pred_check
    _
  $region3: #{_loss.1} parent=0 // pred_check_branch
    %10 = sbr.rel (0) target = $region5
  $region4: #{_loss.1} parent=0 // pred_region
    _
  $region5: #{_loss.1} parent=0 // pred_fallthru
    _
  // Predicated region
  $region6: #{_loss.1} parent=0 // pred_check
    _
  $region7: #{_loss.1} parent=0 // pred_check_branch
    %12 = sbr.rel (0) target = $region9
  $region8: #{_loss.1} parent=0 // pred_region
    _
  $region9: #{_loss.1} parent=0 // pred_fallthru
    _
  // Predicated region
  $region10: #{_loss.1} parent=0 // pred_check
    _
  $region11: #{_loss.1} parent=0 // pred_check_branch
    %14 = sbr.rel (0) target = $region13
  $region12: #{_loss.1} parent=0 // pred_region
    _
  $region13: #{_loss.1} parent=0 // pred_fallthru
    _
  // Predicated region
  $region14: #{_loss.1} parent=0 // pred_check
    _
  $region15: #{_loss.1} parent=0 // pred_check_branch
    %16 = sbr.rel (0) target = $region17
  $region16: #{_loss.1} parent=0 // pred_region
    _
  $region17: #{_loss.1} parent=0 // pred_fallthru
    _
  %p18 = scmp.eq.s32.totalorder 0, 0
  // Predicated region
  $region18: #{_loss.1} parent=0 // pred_check
    %p19 = pneg %p18
  $region19: #{_loss.1} parent=0 // pred_check_branch
    %21 = sbr.rel (%p19) target = $region21
  $region20: #{_loss.1} parent=0 // pred_region
    %vm22 = vcmask 7168
    %23 = vst.msk [vmem:[#allocation2] sm:$0xff] %vm22, 0.0
    %24 = vst.msk [vmem:[#allocation2 + $0x8] sm:$0xff] %vm22, 0.0
    %25 = vst.msk [vmem:[#allocation2 + $0x10] sm:$0xff] %vm22, 0.0
    %26 = vst.msk [vmem:[#allocation2 + $0x18] sm:$0xff] %vm22, 0.0
    %27 = vst.msk [vmem:[#allocation2 + $0x20] sm:$0xff] %vm22, 0.0
    %28 = vst.msk [vmem:[#allocation2 + $0x28] sm:$0xff] %vm22, 0.0
    %29 = vst.msk [vmem:[#allocation2 + $0x30] sm:$0xff] %vm22, 0.0
    %30 = vst.msk [vmem:[#allocation2 + $0x38] sm:$0xff] %vm22, 0.0
    %31 = vst.msk [vmem:[#allocation2 + $0x40] sm:$0xff] %vm22, 0.0
    %32 = vst.msk [vmem:[#allocation2 + $0x48] sm:$0xff] %vm22, 0.0
    %33 = vst.msk [vmem:[#allocation2 + $0x50] sm:$0xff] %vm22, 0.0
    %34 = vst.msk [vmem:[#allocation2 + $0x58] sm:$0xff] %vm22, 0.0
    %35 = vst.msk [vmem:[#allocation2 + $0x60] sm:$0xff] %vm22, 0.0
    %36 = vst.msk [vmem:[#allocation2 + $0x68] sm:$0xff] %vm22, 0.0
    %37 = vst.msk [vmem:[#allocation2 + $0x70] sm:$0xff] %vm22, 0.0
    %38 = vst.msk [vmem:[#allocation2 + $0x78] sm:$0xff] %vm22, 0.0
  $region21: #{_loss.1} parent=0 // pred_fallthru
    _
  %v39 = vld [vmem:[%s0] sm:$0xf]
  %v40 = vld [vmem:[%s0 + $0x4] sm:$0xf]
  %v41 = vld [vmem:[%s0 + $0x8] sm:$0xf]
  %v42 = vld [vmem:[%s0 + $0xc] sm:$0xf]
  %v43 = vld [vmem:[%s0 + $0x10] sm:$0xf]
  %v44 = vld [vmem:[%s0 + $0x14] sm:$0xf]
  %v45 = vld [vmem:[%s0 + $0x18] sm:$0xf]
  %v46 = vld [vmem:[%s0 + $0x1c] sm:$0xf]
  %v47 = vld [vmem:[%s0 + $0x20] sm:$0xf]
  %v48 = vld [vmem:[%s0 + $0x24] sm:$0xf]
  %v49 = vld [vmem:[%s0 + $0x28] sm:$0xf]
  %v50 = vld [vmem:[%s0 + $0x2c] sm:$0xf]
  %v51 = vld [vmem:[%s0 + $0x30] sm:$0xf]
  %v52 = vld [vmem:[%s0 + $0x34] sm:$0xf]
  %v53 = vld [vmem:[%s0 + $0x38] sm:$0xf]
  %v54 = vld [vmem:[%s0 + $0x3c] sm:$0xf]
  %v55 = vld [vmem:[%s1] sm:$0xf]
  %v56 = vld [vmem:[%s1 + $0x4] sm:$0xf]
  %v57 = vld [vmem:[%s1 + $0x8] sm:$0xf]
  %v58 = vld [vmem:[%s1 + $0xc] sm:$0xf]
  %v59 = vld [vmem:[%s1 + $0x10] sm:$0xf]
  %v60 = vld [vmem:[%s1 + $0x14] sm:$0xf]
  %v61 = vld [vmem:[%s1 + $0x18] sm:$0xf]
  %v62 = vld [vmem:[%s1 + $0x1c] sm:$0xf]
  %v63 = vld [vmem:[%s1 + $0x20] sm:$0xf]
  %v64 = vld [vmem:[%s1 + $0x24] sm:$0xf]
  %v65 = vld [vmem:[%s1 + $0x28] sm:$0xf]
  %v66 = vld [vmem:[%s1 + $0x2c] sm:$0xf]
  %v67 = vld [vmem:[%s1 + $0x30] sm:$0xf]
  %v68 = vld [vmem:[%s1 + $0x34] sm:$0xf]
  %v69 = vld [vmem:[%s1 + $0x38] sm:$0xf]
  %v70 = vld [vmem:[%s1 + $0x3c] sm:$0xf]
  %v87 = vunpack.c.l.b16 %v39
  %v88 = vunpack.c.l.b16 %v40
  %v89 = vunpack.c.l.b16 %v41
  %v90 = vunpack.c.l.b16 %v42
  %v91 = vunpack.c.l.b16 %v43
  %v92 = vunpack.c.l.b16 %v44
  %v93 = vunpack.c.l.b16 %v45
  %v94 = vunpack.c.l.b16 %v46
  %v95 = vunpack.c.l.b16 %v47
  %v96 = vunpack.c.l.b16 %v48
  %v97 = vunpack.c.l.b16 %v49
  %v98 = vunpack.c.l.b16 %v50
  %v99 = vunpack.c.l.b16 %v51
  %v100 = vunpack.c.l.b16 %v52
  %v101 = vunpack.c.l.b16 %v53
  %v102 = vunpack.c.l.b16 %v54
  %v103 = vpack.c.b16 %v88, %v87
  %v104 = vpack.c.b16 %v90, %v89
  %v105 = vpack.c.b16 %v92, %v91
  %v106 = vpack.c.b16 %v94, %v93
  %v107 = vpack.c.b16 %v96, %v95
  %v108 = vpack.c.b16 %v98, %v97
  %v109 = vpack.c.b16 %v100, %v99
  %v110 = vpack.c.b16 %v102, %v101
  %v127 = vunpack.c.l.b16 %v55
  %v128 = vunpack.c.l.b16 %v56
  %v129 = vunpack.c.l.b16 %v57
  %v130 = vunpack.c.l.b16 %v58
  %v131 = vunpack.c.l.b16 %v59
  %v132 = vunpack.c.l.b16 %v60
  %v133 = vunpack.c.l.b16 %v61
  %v134 = vunpack.c.l.b16 %v62
  %v135 = vunpack.c.l.b16 %v63
  %v136 = vunpack.c.l.b16 %v64
  %v137 = vunpack.c.l.b16 %v65
  %v138 = vunpack.c.l.b16 %v66
  %v139 = vunpack.c.l.b16 %v67
  %v140 = vunpack.c.l.b16 %v68
  %v141 = vunpack.c.l.b16 %v69
  %v142 = vunpack.c.l.b16 %v70
  %v143 = vpack.c.b16 %v128, %v127
  %v144 = vpack.c.b16 %v130, %v129
  %v145 = vpack.c.b16 %v132, %v131
  %v146 = vpack.c.b16 %v134, %v133
  %v147 = vpack.c.b16 %v136, %v135
  %v148 = vpack.c.b16 %v138, %v137
  %v149 = vpack.c.b16 %v140, %v139
  %v150 = vpack.c.b16 %v142, %v141
  %vm151 = vcmask 261120
  %v153 = vsel %vm151, %v103, 0
  %v156 = vsel %vm151, %v104, 0
  %v159 = vsel %vm151, %v105, 0
  %v162 = vsel %vm151, %v106, 0
  %v165 = vsel %vm151, %v107, 0
  %v168 = vsel %vm151, %v108, 0
  %v171 = vsel %vm151, %v109, 0
  %v174 = vsel %vm151, %v110, 0
  %v177 = vsel %vm151, %v143, 0
  %v180 = vsel %vm151, %v144, 0
  %v183 = vsel %vm151, %v145, 0
  %v186 = vsel %vm151, %v146, 0
  %v189 = vsel %vm151, %v147, 0
  %v192 = vsel %vm151, %v148, 0
  %v195 = vsel %vm151, %v149, 0
  %v198 = vsel %vm151, %v150, 0
  %200 = vmatprep.subr.bf16.mxu0 0
  %201 = vmatpush1.bf16.xpose.msra.mxu0 %v177
  %202 = vmatprep.subr.bf16.mxu0 0
  %203 = vmatpush1.bf16.xpose.msra.mxu0 %v180
  %204 = vmatprep.subr.bf16.mxu0 0
  %205 = vmatpush1.bf16.xpose.msra.mxu0 %v183
  %206 = vmatprep.subr.bf16.mxu0 0
  %207 = vmatpush1.bf16.xpose.msra.mxu0 %v186
  %208 = vmatprep.subr.bf16.mxu0 0
  %209 = vmatpush1.bf16.xpose.msra.mxu0 %v189
  %210 = vmatprep.subr.bf16.mxu0 0
  %211 = vmatpush1.bf16.xpose.msra.mxu0 %v192
  %212 = vmatprep.subr.bf16.mxu0 0
  %213 = vmatpush1.bf16.xpose.msra.mxu0 %v195
  %214 = vmatprep.subr.bf16.mxu0 0
  %215 = vmatpush1.bf16.xpose.msra.mxu0 %v198
  %216 = vmatprep.subr.bf16.mxu0 0
  %217 = vmatpush1.bf16.xpose.msra.mxu0 0
  %218 = vmatprep.subr.bf16.mxu0 0
  %219 = vmatpush1.bf16.xpose.msra.mxu0 0
  %220 = vmatprep.subr.bf16.mxu0 0
  %221 = vmatpush1.bf16.xpose.msra.mxu0 0
  %222 = vmatprep.subr.bf16.mxu0 0
  %223 = vmatpush1.bf16.xpose.msra.mxu0 0
  %224 = vmatprep.subr.bf16.mxu0 0
  %225 = vmatpush1.bf16.xpose.msra.mxu0 0
  %226 = vmatprep.subr.bf16.mxu0 0
  %227 = vmatpush1.bf16.xpose.msra.mxu0 0
  %228 = vmatprep.subr.bf16.mxu0 0
  %229 = vmatpush1.bf16.xpose.msra.mxu0 0
  %230 = vmatprep.subr.bf16.mxu0 0
  %231 = vmatpush1.bf16.xpose.msra.mxu0 0
  %232 = vmatprep.mubr.bf16.mxu0 0
  %233 = vmatmul.mubr.bf16.gmra.mrb[0].mxu0 %v153
  %v234 = vpop.f32.mrb[0].mxu0
  %v235 = vadd.f32 0.0, %v234
  %v236 = vpop.f32.mrb[0].mxu0
  %v237 = vpop.f32.mrb[0].mxu0
  %v238 = vadd.f32 0.0, %v237
  %v239 = vpop.f32.mrb[0].mxu0
  %240 = vmatprep.mubr.bf16.mxu0 0
  %241 = vmatmul.mubr.bf16.gmra.mrb[0].mxu0 %v156
  %v242 = vpop.f32.mrb[0].mxu0
  %v243 = vadd.f32 0.0, %v242
  %v244 = vpop.f32.mrb[0].mxu0
  %v245 = vpop.f32.mrb[0].mxu0
  %v246 = vadd.f32 0.0, %v245
  %v247 = vpop.f32.mrb[0].mxu0
  %248 = vmatprep.mubr.bf16.mxu0 0
  %249 = vmatmul.mubr.bf16.gmra.mrb[0].mxu0 %v159
  %v250 = vpop.f32.mrb[0].mxu0
  %v251 = vadd.f32 0.0, %v250
  %v252 = vpop.f32.mrb[0].mxu0
  %v253 = vpop.f32.mrb[0].mxu0
  %v254 = vadd.f32 0.0, %v253
  %v255 = vpop.f32.mrb[0].mxu0
  %256 = vmatprep.mubr.bf16.mxu0 0
  %257 = vmatmul.mubr.bf16.gmra.mrb[0].mxu0 %v162
  %v258 = vpop.f32.mrb[0].mxu0
  %v259 = vadd.f32 0.0, %v258
  %v260 = vpop.f32.mrb[0].mxu0
  %v261 = vpop.f32.mrb[0].mxu0
  %v262 = vadd.f32 0.0, %v261
  %v263 = vpop.f32.mrb[0].mxu0
  %264 = vmatprep.mubr.bf16.mxu0 0
  %265 = vmatmul.mubr.bf16.gmra.mrb[0].mxu0 %v165
  %v266 = vpop.f32.mrb[0].mxu0
  %v267 = vadd.f32 0.0, %v266
  %v268 = vpop.f32.mrb[0].mxu0
  %v269 = vpop.f32.mrb[0].mxu0
  %v270 = vadd.f32 0.0, %v269
  %v271 = vpop.f32.mrb[0].mxu0
  %272 = vmatprep.mubr.bf16.mxu0 0
  %273 = vmatmul.mubr.bf16.gmra.mrb[0].mxu0 %v168
  %v274 = vpop.f32.mrb[0].mxu0
  %v275 = vadd.f32 0.0, %v274
  %v276 = vpop.f32.mrb[0].mxu0
  %v277 = vpop.f32.mrb[0].mxu0
  %v278 = vadd.f32 0.0, %v277
  %v279 = vpop.f32.mrb[0].mxu0
  %280 = vmatprep.mubr.bf16.mxu0 0
  %281 = vmatmul.mubr.bf16.gmra.mrb[0].mxu0 %v171
  %v282 = vpop.f32.mrb[0].mxu0
  %v283 = vadd.f32 0.0, %v282
  %v284 = vpop.f32.mrb[0].mxu0
  %v285 = vpop.f32.mrb[0].mxu0
  %v286 = vadd.f32 0.0, %v285
  %v287 = vpop.f32.mrb[0].mxu0
  %288 = vmatprep.mubr.bf16.mxu0 0
  %289 = vmatmul.mubr.bf16.gmra.mrb[0].mxu0 %v174
  %v290 = vpop.f32.mrb[0].mxu0
  %v291 = vadd.f32 0.0, %v290
  %v292 = vpop.f32.mrb[0].mxu0
  %v293 = vpop.f32.mrb[0].mxu0
  %v294 = vadd.f32 0.0, %v293
  %v295 = vpop.f32.mrb[0].mxu0
  %296 = vdwg.mxu0
  %v297 = vld [vmem:[%s2] sm:$0xf]
  %v298 = vld [vmem:[%s2 + $0x4] sm:$0xf]
  %v299 = vld [vmem:[%s2 + $0x8] sm:$0xf]
  %v300 = vld [vmem:[%s2 + $0xc] sm:$0xf]
  %v301 = vld [vmem:[%s2 + $0x10] sm:$0xf]
  %v302 = vld [vmem:[%s2 + $0x14] sm:$0xf]
  %v303 = vld [vmem:[%s2 + $0x18] sm:$0xf]
  %v304 = vld [vmem:[%s2 + $0x1c] sm:$0xf]
  %v305 = vld [vmem:[%s2 + $0x20] sm:$0xf]
  %v306 = vld [vmem:[%s2 + $0x24] sm:$0xf]
  %v307 = vld [vmem:[%s2 + $0x28] sm:$0xf]
  %v308 = vld [vmem:[%s2 + $0x2c] sm:$0xf]
  %v309 = vld [vmem:[%s2 + $0x30] sm:$0xf]
  %v310 = vld [vmem:[%s2 + $0x34] sm:$0xf]
  %v311 = vld [vmem:[%s2 + $0x38] sm:$0xf]
  %v312 = vld [vmem:[%s2 + $0x3c] sm:$0xf]
  %v313 = vld [vmem:[%s3] sm:$0xf]
  %v314 = vld [vmem:[%s3 + $0x4] sm:$0xf]
  %v315 = vld [vmem:[%s3 + $0x8] sm:$0xf]
  %v316 = vld [vmem:[%s3 + $0xc] sm:$0xf]
  %v317 = vld [vmem:[%s3 + $0x10] sm:$0xf]
  %v318 = vld [vmem:[%s3 + $0x14] sm:$0xf]
  %v319 = vld [vmem:[%s3 + $0x18] sm:$0xf]
  %v320 = vld [vmem:[%s3 + $0x1c] sm:$0xf]
  %v321 = vld [vmem:[%s3 + $0x20] sm:$0xf]
  %v322 = vld [vmem:[%s3 + $0x24] sm:$0xf]
  %v323 = vld [vmem:[%s3 + $0x28] sm:$0xf]
  %v324 = vld [vmem:[%s3 + $0x2c] sm:$0xf]
  %v325 = vld [vmem:[%s3 + $0x30] sm:$0xf]
  %v326 = vld [vmem:[%s3 + $0x34] sm:$0xf]
  %v327 = vld [vmem:[%s3 + $0x38] sm:$0xf]
  %v328 = vld [vmem:[%s3 + $0x3c] sm:$0xf]
  %v345 = vunpack.c.l.b16 %v297
  %v346 = vunpack.c.l.b16 %v298
  %v347 = vunpack.c.l.b16 %v299
  %v348 = vunpack.c.l.b16 %v300
  %v349 = vunpack.c.l.b16 %v301
  %v350 = vunpack.c.l.b16 %v302
  %v351 = vunpack.c.l.b16 %v303
  %v352 = vunpack.c.l.b16 %v304
  %v353 = vunpack.c.l.b16 %v305
  %v354 = vunpack.c.l.b16 %v306
  %v355 = vunpack.c.l.b16 %v307
  %v356 = vunpack.c.l.b16 %v308
  %v357 = vunpack.c.l.b16 %v309
  %v358 = vunpack.c.l.b16 %v310
  %v359 = vunpack.c.l.b16 %v311
  %v360 = vunpack.c.l.b16 %v312
  %v361 = vpack.c.b16 %v346, %v345
  %v362 = vpack.c.b16 %v348, %v347
  %v363 = vpack.c.b16 %v350, %v349
  %v364 = vpack.c.b16 %v352, %v351
  %v365 = vpack.c.b16 %v354, %v353
  %v366 = vpack.c.b16 %v356, %v355
  %v367 = vpack.c.b16 %v358, %v357
  %v368 = vpack.c.b16 %v360, %v359
  %v385 = vunpack.c.l.b16 %v313
  %v386 = vunpack.c.l.b16 %v314
  %v387 = vunpack.c.l.b16 %v315
  %v388 = vunpack.c.l.b16 %v316
  %v389 = vunpack.c.l.b16 %v317
  %v390 = vunpack.c.l.b16 %v318
  %v391 = vunpack.c.l.b16 %v319
  %v392 = vunpack.c.l.b16 %v320
  %v393 = vunpack.c.l.b16 %v321
  %v394 = vunpack.c.l.b16 %v322
  %v395 = vunpack.c.l.b16 %v323
  %v396 = vunpack.c.l.b16 %v324
  %v397 = vunpack.c.l.b16 %v325
  %v398 = vunpack.c.l.b16 %v326
  %v399 = vunpack.c.l.b16 %v327
  %v400 = vunpack.c.l.b16 %v328
  %v401 = vpack.c.b16 %v386, %v385
  %v402 = vpack.c.b16 %v388, %v387
  %v403 = vpack.c.b16 %v390, %v389
  %v404 = vpack.c.b16 %v392, %v391
  %v405 = vpack.c.b16 %v394, %v393
  %v406 = vpack.c.b16 %v396, %v395
  %v407 = vpack.c.b16 %v398, %v397
  %v408 = vpack.c.b16 %v400, %v399
  %vm409 = vcmask 31744
  %v411 = vsel %vm409, %v361, 0
  %v414 = vsel %vm409, %v362, 0
  %v417 = vsel %vm409, %v363, 0
  %v420 = vsel %vm409, %v364, 0
  %v423 = vsel %vm409, %v365, 0
  %v426 = vsel %vm409, %v366, 0
  %v429 = vsel %vm409, %v367, 0
  %v432 = vsel %vm409, %v368, 0
  %v435 = vsel %vm409, %v401, 0
  %v438 = vsel %vm409, %v402, 0
  %v441 = vsel %vm409, %v403, 0
  %v444 = vsel %vm409, %v404, 0
  %v447 = vsel %vm409, %v405, 0
  %v450 = vsel %vm409, %v406, 0
  %v453 = vsel %vm409, %v407, 0
  %v456 = vsel %vm409, %v408, 0
  %458 = vmatprep.subr.bf16.mxu0 0
  %459 = vmatpush1.bf16.xpose.msra.mxu0 %v435
  %460 = vmatprep.subr.bf16.mxu0 0
  %461 = vmatpush1.bf16.xpose.msra.mxu0 %v438
  %462 = vmatprep.subr.bf16.mxu0 0
  %463 = vmatpush1.bf16.xpose.msra.mxu0 %v441
  %464 = vmatprep.subr.bf16.mxu0 0
  %465 = vmatpush1.bf16.xpose.msra.mxu0 %v444
  %466 = vmatprep.subr.bf16.mxu0 0
  %467 = vmatpush1.bf16.xpose.msra.mxu0 %v447
  %468 = vmatprep.subr.bf16.mxu0 0
  %469 = vmatpush1.bf16.xpose.msra.mxu0 %v450
  %470 = vmatprep.subr.bf16.mxu0 0
  %471 = vmatpush1.bf16.xpose.msra.mxu0 %v453
  %472 = vmatprep.subr.bf16.mxu0 0
  %473 = vmatpush1.bf16.xpose.msra.mxu0 %v456
  %474 = vmatprep.subr.bf16.mxu0 0
  %475 = vmatpush1.bf16.xpose.msra.mxu0 0
  %476 = vmatprep.subr.bf16.mxu0 0
  %477 = vmatpush1.bf16.xpose.msra.mxu0 0
  %478 = vmatprep.subr.bf16.mxu0 0
  %479 = vmatpush1.bf16.xpose.msra.mxu0 0
  %480 = vmatprep.subr.bf16.mxu0 0
  %481 = vmatpush1.bf16.xpose.msra.mxu0 0
  %482 = vmatprep.subr.bf16.mxu0 0
  %483 = vmatpush1.bf16.xpose.msra.mxu0 0
  %484 = vmatprep.subr.bf16.mxu0 0
  %485 = vmatpush1.bf16.xpose.msra.mxu0 0
  %486 = vmatprep.subr.bf16.mxu0 0
  %487 = vmatpush1.bf16.xpose.msra.mxu0 0
  %488 = vmatprep.subr.bf16.mxu0 0
  %489 = vmatpush1.bf16.xpose.msra.mxu0 0
  %490 = vmatprep.mubr.bf16.mxu0 0
  %491 = vmatmul.mubr.bf16.gmra.mrb[0].mxu0 %v411
  %v492 = vpop.f32.mrb[0].mxu0
  %v493 = vadd.f32 0.0, %v492
  %v494 = vpop.f32.mrb[0].mxu0
  %v495 = vpop.f32.mrb[0].mxu0
  %v496 = vadd.f32 0.0, %v495
  %v497 = vpop.f32.mrb[0].mxu0
  %498 = vmatprep.mubr.bf16.mxu0 0
  %499 = vmatmul.mubr.bf16.gmra.mrb[0].mxu0 %v414
  %v500 = vpop.f32.mrb[0].mxu0
  %v501 = vadd.f32 0.0, %v500
  %v502 = vpop.f32.mrb[0].mxu0
  %v503 = vpop.f32.mrb[0].mxu0
  %v504 = vadd.f32 0.0, %v503
  %v505 = vpop.f32.mrb[0].mxu0
  %506 = vmatprep.mubr.bf16.mxu0 0
  %507 = vmatmul.mubr.bf16.gmra.mrb[0].mxu0 %v417
  %v508 = vpop.f32.mrb[0].mxu0
  %v509 = vadd.f32 0.0, %v508
  %v510 = vpop.f32.mrb[0].mxu0
  %v511 = vpop.f32.mrb[0].mxu0
  %v512 = vadd.f32 0.0, %v511
  %v513 = vpop.f32.mrb[0].mxu0
  %514 = vmatprep.mubr.bf16.mxu0 0
  %515 = vmatmul.mubr.bf16.gmra.mrb[0].mxu0 %v420
  %v516 = vpop.f32.mrb[0].mxu0
  %v517 = vadd.f32 0.0, %v516
  %v518 = vpop.f32.mrb[0].mxu0
  %v519 = vpop.f32.mrb[0].mxu0
  %v520 = vadd.f32 0.0, %v519
  %v521 = vpop.f32.mrb[0].mxu0
  %522 = vmatprep.mubr.bf16.mxu0 0
  %523 = vmatmul.mubr.bf16.gmra.mrb[0].mxu0 %v423
  %v524 = vpop.f32.mrb[0].mxu0
  %v525 = vadd.f32 0.0, %v524
  %v526 = vpop.f32.mrb[0].mxu0
  %v527 = vpop.f32.mrb[0].mxu0
  %v528 = vadd.f32 0.0, %v527
  %v529 = vpop.f32.mrb[0].mxu0
  %530 = vmatprep.mubr.bf16.mxu0 0
  %531 = vmatmul.mubr.bf16.gmra.mrb[0].mxu0 %v426
  %v532 = vpop.f32.mrb[0].mxu0
  %v533 = vadd.f32 0.0, %v532
  %v534 = vpop.f32.mrb[0].mxu0
  %v535 = vpop.f32.mrb[0].mxu0
  %v536 = vadd.f32 0.0, %v535
  %v537 = vpop.f32.mrb[0].mxu0
  %538 = vmatprep.mubr.bf16.mxu0 0
  %539 = vmatmul.mubr.bf16.gmra.mrb[0].mxu0 %v429
  %v540 = vpop.f32.mrb[0].mxu0
  %v541 = vadd.f32 0.0, %v540
  %v542 = vpop.f32.mrb[0].mxu0
  %v543 = vpop.f32.mrb[0].mxu0
  %v544 = vadd.f32 0.0, %v543
  %v545 = vpop.f32.mrb[0].mxu0
  %546 = vmatprep.mubr.bf16.mxu0 0
  %547 = vmatmul.mubr.bf16.gmra.mrb[0].mxu0 %v432
  %v548 = vpop.f32.mrb[0].mxu0
  %v549 = vadd.f32 0.0, %v548
  %v550 = vpop.f32.mrb[0].mxu0
  %v551 = vpop.f32.mrb[0].mxu0
  %v552 = vadd.f32 0.0, %v551
  %v553 = vpop.f32.mrb[0].mxu0
  %554 = vdwg.mxu0
  %v555 = vsub.f32 %v235, %v493
  %v556 = vsub.f32 %v238, %v496
  %v557 = vsub.f32 %v243, %v501
  %v558 = vsub.f32 %v246, %v504
  %v559 = vsub.f32 %v251, %v509
  %v560 = vsub.f32 %v254, %v512
  %v561 = vsub.f32 %v259, %v517
  %v562 = vsub.f32 %v262, %v520
  %v563 = vsub.f32 %v267, %v525
  %v564 = vsub.f32 %v270, %v528
  %v565 = vsub.f32 %v275, %v533
  %v566 = vsub.f32 %v278, %v536
  %v567 = vsub.f32 %v283, %v541
  %v568 = vsub.f32 %v286, %v544
  %v569 = vsub.f32 %v291, %v549
  %v570 = vsub.f32 %v294, %v552
  %v571 = vld [vmem:[#allocation2] sm:$0xff]
  %v572 = vld [vmem:[#allocation2 + $0x8] sm:$0xff]
  %v573 = vld [vmem:[#allocation2 + $0x10] sm:$0xff]
  %v574 = vld [vmem:[#allocation2 + $0x18] sm:$0xff]
  %v575 = vld [vmem:[#allocation2 + $0x20] sm:$0xff]
  %v576 = vld [vmem:[#allocation2 + $0x28] sm:$0xff]
  %v577 = vld [vmem:[#allocation2 + $0x30] sm:$0xff]
  %v578 = vld [vmem:[#allocation2 + $0x38] sm:$0xff]
  %v579 = vld [vmem:[#allocation2 + $0x40] sm:$0xff]
  %v580 = vld [vmem:[#allocation2 + $0x48] sm:$0xff]
  %v581 = vld [vmem:[#allocation2 + $0x50] sm:$0xff]
  %v582 = vld [vmem:[#allocation2 + $0x58] sm:$0xff]
  %v583 = vld [vmem:[#allocation2 + $0x60] sm:$0xff]
  %v584 = vld [vmem:[#allocation2 + $0x68] sm:$0xff]
  %v585 = vld [vmem:[#allocation2 + $0x70] sm:$0xff]
  %v586 = vld [vmem:[#allocation2 + $0x78] sm:$0xff]
  %v587 = vmul.f32 %v555, %v555
  %v588 = vmul.f32 %v556, %v556
  %v589 = vmul.f32 %v557, %v557
  %v590 = vmul.f32 %v558, %v558
  %v591 = vmul.f32 %v559, %v559
  %v592 = vmul.f32 %v560, %v560
  %v593 = vmul.f32 %v561, %v561
  %v594 = vmul.f32 %v562, %v562
  %v595 = vmul.f32 %v563, %v563
  %v596 = vmul.f32 %v564, %v564
  %v597 = vmul.f32 %v565, %v565
  %v598 = vmul.f32 %v566, %v566
  %v599 = vmul.f32 %v567, %v567
  %v600 = vmul.f32 %v568, %v568
  %v601 = vmul.f32 %v569, %v569
  %v602 = vmul.f32 %v570, %v570
  %603 = vadd.xlane.f32.xlu0 %v587
  %v604 = vpop.xlane.xlu0 %603
  %605 = vadd.xlane.f32.xlu0 %v588
  %v606 = vpop.xlane.xlu0 %605
  %607 = vadd.xlane.f32.xlu0 %v589
  %v608 = vpop.xlane.xlu0 %607
  %609 = vadd.xlane.f32.xlu0 %v590
  %v610 = vpop.xlane.xlu0 %609
  %611 = vadd.xlane.f32.xlu0 %v591
  %v612 = vpop.xlane.xlu0 %611
  %613 = vadd.xlane.f32.xlu0 %v592
  %v614 = vpop.xlane.xlu0 %613
  %615 = vadd.xlane.f32.xlu0 %v593
  %v616 = vpop.xlane.xlu0 %615
  %617 = vadd.xlane.f32.xlu0 %v594
  %v618 = vpop.xlane.xlu0 %617
  %619 = vadd.xlane.f32.xlu0 %v595
  %v620 = vpop.xlane.xlu0 %619
  %621 = vadd.xlane.f32.xlu0 %v596
  %v622 = vpop.xlane.xlu0 %621
  %623 = vadd.xlane.f32.xlu0 %v597
  %v624 = vpop.xlane.xlu0 %623
  %625 = vadd.xlane.f32.xlu0 %v598
  %v626 = vpop.xlane.xlu0 %625
  %627 = vadd.xlane.f32.xlu0 %v599
  %v628 = vpop.xlane.xlu0 %627
  %629 = vadd.xlane.f32.xlu0 %v600
  %v630 = vpop.xlane.xlu0 %629
  %631 = vadd.xlane.f32.xlu0 %v601
  %v632 = vpop.xlane.xlu0 %631
  %633 = vadd.xlane.f32.xlu0 %v602
  %v634 = vpop.xlane.xlu0 %633
  %v635 = vadd.f32 %v571, %v604
  %v636 = vadd.f32 %v572, %v606
  %v637 = vadd.f32 %v573, %v608
  %v638 = vadd.f32 %v574, %v610
  %v639 = vadd.f32 %v575, %v612
  %v640 = vadd.f32 %v576, %v614
  %v641 = vadd.f32 %v577, %v616
  %v642 = vadd.f32 %v578, %v618
  %v643 = vadd.f32 %v579, %v620
  %v644 = vadd.f32 %v580, %v622
  %v645 = vadd.f32 %v581, %v624
  %v646 = vadd.f32 %v582, %v626
  %v647 = vadd.f32 %v583, %v628
  %v648 = vadd.f32 %v584, %v630
  %v649 = vadd.f32 %v585, %v632
  %v650 = vadd.f32 %v586, %v634
  %vm651 = vcmask 7168
  %652 = vst.msk [vmem:[#allocation2] sm:$0xff] %vm651, %v635
  %653 = vst.msk [vmem:[#allocation2 + $0x8] sm:$0xff] %vm651, %v636
  %654 = vst.msk [vmem:[#allocation2 + $0x10] sm:$0xff] %vm651, %v637
  %655 = vst.msk [vmem:[#allocation2 + $0x18] sm:$0xff] %vm651, %v638
  %656 = vst.msk [vmem:[#allocation2 + $0x20] sm:$0xff] %vm651, %v639
  %657 = vst.msk [vmem:[#allocation2 + $0x28] sm:$0xff] %vm651, %v640
  %658 = vst.msk [vmem:[#allocation2 + $0x30] sm:$0xff] %vm651, %v641
  %659 = vst.msk [vmem:[#allocation2 + $0x38] sm:$0xff] %vm651, %v642
  %660 = vst.msk [vmem:[#allocation2 + $0x40] sm:$0xff] %vm651, %v643
  %661 = vst.msk [vmem:[#allocation2 + $0x48] sm:$0xff] %vm651, %v644
  %662 = vst.msk [vmem:[#allocation2 + $0x50] sm:$0xff] %vm651, %v645
  %663 = vst.msk [vmem:[#allocation2 + $0x58] sm:$0xff] %vm651, %v646
  %664 = vst.msk [vmem:[#allocation2 + $0x60] sm:$0xff] %vm651, %v647
  %665 = vst.msk [vmem:[#allocation2 + $0x68] sm:$0xff] %vm651, %v648
  %666 = vst.msk [vmem:[#allocation2 + $0x70] sm:$0xff] %vm651, %v649
  %667 = vst.msk [vmem:[#allocation2 + $0x78] sm:$0xff] %vm651, %v650
  // Predicated region
  $region22: #{_loss.1} parent=0 // pred_check
    %p668 = pneg %p18
  $region23: #{_loss.1} parent=0 // pred_check_branch
    %670 = sbr.rel (%p668) target = $region25
  $region24: #{_loss.1} parent=0 // pred_region
    %v671 = vld [vmem:[#allocation2] sm:$0xff]
    %v672 = vld [vmem:[#allocation2 + $0x8] sm:$0xff]
    %v673 = vld [vmem:[#allocation2 + $0x10] sm:$0xff]
    %v674 = vld [vmem:[#allocation2 + $0x18] sm:$0xff]
    %v675 = vld [vmem:[#allocation2 + $0x20] sm:$0xff]
    %v676 = vld [vmem:[#allocation2 + $0x28] sm:$0xff]
    %v677 = vld [vmem:[#allocation2 + $0x30] sm:$0xff]
    %v678 = vld [vmem:[#allocation2 + $0x38] sm:$0xff]
    %v679 = vld [vmem:[#allocation2 + $0x40] sm:$0xff]
    %v680 = vld [vmem:[#allocation2 + $0x48] sm:$0xff]
    %v681 = vld [vmem:[#allocation2 + $0x50] sm:$0xff]
    %v682 = vld [vmem:[#allocation2 + $0x58] sm:$0xff]
    %v683 = vld [vmem:[#allocation2 + $0x60] sm:$0xff]
    %v684 = vld [vmem:[#allocation2 + $0x68] sm:$0xff]
    %v685 = vld [vmem:[#allocation2 + $0x70] sm:$0xff]
    %v686 = vld [vmem:[#allocation2 + $0x78] sm:$0xff]
    %687 = vst.msk [vmem:[%s4] sm:$0xff] %vm651, %v671
    %688 = vst.msk [vmem:[%s4 + $0x8] sm:$0xff] %vm651, %v672
    %689 = vst.msk [vmem:[%s4 + $0x10] sm:$0xff] %vm651, %v673
    %690 = vst.msk [vmem:[%s4 + $0x18] sm:$0xff] %vm651, %v674
    %691 = vst.msk [vmem:[%s4 + $0x20] sm:$0xff] %vm651, %v675
    %692 = vst.msk [vmem:[%s4 + $0x28] sm:$0xff] %vm651, %v676
    %693 = vst.msk [vmem:[%s4 + $0x30] sm:$0xff] %vm651, %v677
    %694 = vst.msk [vmem:[%s4 + $0x38] sm:$0xff] %vm651, %v678
    %695 = vst.msk [vmem:[%s4 + $0x40] sm:$0xff] %vm651, %v679
    %696 = vst.msk [vmem:[%s4 + $0x48] sm:$0xff] %vm651, %v680
    %697 = vst.msk [vmem:[%s4 + $0x50] sm:$0xff] %vm651, %v681
    %698 = vst.msk [vmem:[%s4 + $0x58] sm:$0xff] %vm651, %v682
    %699 = vst.msk [vmem:[%s4 + $0x60] sm:$0xff] %vm651, %v683
    %700 = vst.msk [vmem:[%s4 + $0x68] sm:$0xff] %vm651, %v684
    %701 = vst.msk [vmem:[%s4 + $0x70] sm:$0xff] %vm651, %v685
    %702 = vst.msk [vmem:[%s4 + $0x78] sm:$0xff] %vm651, %v686
  $region25: #{_loss.1} parent=0 // pred_fallthru
    _
  // Predicated region
  $region26: #{_loss.1} parent=0 // pred_check
    _
  $region27: #{_loss.1} parent=0 // pred_check_branch
    %704 = sbr.rel (0) target = $region29
  $region28: #{_loss.1} parent=0 // pred_region
    _
  $region29: #{_loss.1} parent=0 // pred_fallthru
    _
  // Predicated region
  $region30: #{_loss.1} parent=0 // pred_check
    _
  $region31: #{_loss.1} parent=0 // pred_check_branch
    %706 = sbr.rel (0) target = $region33
  $region32: #{_loss.1} parent=0 // pred_region
    _
  $region33: #{_loss.1} parent=0 // pred_fallthru
    _

</llo_original>
